<compile_context>
chip_gen: v6e
topology: v6e:2x2x1
jax: 0.10.0
libtpu: 0.0.40
codegen_flags: <defaults>
</compile_context>

<pallas_src>
import jax
import jax.numpy as jnp
from jax import lax
from jax.experimental import pallas as pl
from jax.experimental.pallas import tpu as pltpu


INPUT_DIM = 7
HIDDEN_DIM = 128
EMBED_DIM = 64


def subgoal_encoder_kernel(x_ref, w1_ref, w2_ref, b2_ref, g_ref, o_ref):
    # x_ref : (bb2, 16)   bf16 -- rows 2r and 2r+1 packed per sublane row,
    #                             each with a trailing 1.0 (bias folded into W1)
    # w1_ref: (16, 256)   bf16 -- block-diag([W1; b1], [W1; b1])
    # w2_ref: (256, 128)  bf16 -- block-diag(W2, W2)
    # b2_ref: (1, 128)    f32  -- [b2 | b2]
    # g_ref : (128, 128)  f32  -- same-64-lane-group indicator (reduce+broadcast)
    # o_ref : (bb2, 128)  f32  -- [embed(2r) | embed(2r+1)] per row (lane dense)
    h = jnp.dot(x_ref[...], w1_ref[...], preferred_element_type=jnp.float32)
    h = jnp.maximum(h, 0.0)                                   # ReLU in f32 (VPU)
    y = jnp.dot(h.astype(jnp.bfloat16), w2_ref[...],
                preferred_element_type=jnp.float32) + b2_ref[...]
    # Per-embedding sum of squares, broadcast back to all 64 lanes of its group
    # in one cheap f32 MXU matmul (no cross-lane VPU/XLU gymnastics needed).
    sq = jnp.dot(y * y, g_ref[...], preferred_element_type=jnp.float32)
    # Equivalent to y / max(||y||_2, 1e-12); rsqrt lands on the EUP slot.
    inv = lax.rsqrt(jnp.maximum(sq, 1e-24))
    o_ref[...] = (y * inv).astype(o_ref.dtype)


def _choose_block_b(B, max_block=1024):
    """Few, fat grid steps (per-step overhead ~0.35us).

    Prefer >=2 grid steps so dimension_semantics=("parallel",) can shard the
    batch across the two TensorCores on v7x; fall back to a single step for
    small batches.  Multi-step blocks are multiples of 16 so the packed input
    tile (block_b//2, 16) and output tile (block_b//2, 128) satisfy the (8,128)
    block rule.
    """
    for cand in (max_block, 512, 256):
        if B % cand == 0 and B // cand >= 2:
            return cand
    return B


def subgoal_encoder(x, w1, b1, w2, b2, *, block_b=None):
    B, D = x.shape
    assert D == INPUT_DIM
    if B % 2:
        raise ValueError("batch must be even (rows are paired into 128-lane output rows)")
    if block_b is None:
        block_b = _choose_block_b(B)
    assert block_b % 2 == 0 and B % block_b == 0

    f32, bf16 = jnp.float32, jnp.bfloat16

    # ---- wrapper-side packing (cheap; with constant weights under jit it folds) ----
    # Fold b1 into W1 via a ones feature (K: 7 -> 8, sublane aligned).
    x_aug = jnp.concatenate([x.astype(f32), jnp.ones((B, 1), f32)], axis=-1)   # (B, 8)
    # Pair consecutive rows: row-major contiguous, so this reshape is free.
    x_wide = x_aug.reshape(B // 2, 2 * (INPUT_DIM + 1)).astype(bf16)           # (B/2, 16)

    w1_aug = jnp.concatenate([w1.astype(f32), b1.reshape(1, HIDDEN_DIM).astype(f32)],
                             axis=0)                                           # (8, 128)
    z1 = jnp.zeros_like(w1_aug)
    w1_wide = jnp.block([[w1_aug, z1], [z1, w1_aug]]).astype(bf16)             # (16, 256)
    w2f = w2.astype(f32)
    z2 = jnp.zeros_like(w2f)
    w2_wide = jnp.block([[w2f, z2], [z2, w2f]]).astype(bf16)                   # (256, 128)
    b2_wide = jnp.tile(b2.reshape(1, EMBED_DIM).astype(f32), (1, 2))           # (1, 128)

    # Group-sum matrix: G[i, j] = 1 iff lanes i, j belong to the same 64-lane embedding.
    grp = jnp.arange(2 * EMBED_DIM) // EMBED_DIM
    g_mat = (grp[:, None] == grp[None, :]).astype(f32)                         # (128, 128)

    bb2 = block_b // 2
    grid = (B // block_b,)
    out_wide = pl.pallas_call(
        subgoal_encoder_kernel,
        out_shape=jax.ShapeDtypeStruct((B // 2, 2 * EMBED_DIM), f32),
        grid_spec=pltpu.PrefetchScalarGridSpec(
            num_scalar_prefetch=0,
            grid=grid,
            in_specs=[
                pl.BlockSpec((bb2, 2 * (INPUT_DIM + 1)), lambda i: (i, 0)),        # x (paired)
                pl.BlockSpec((2 * (INPUT_DIM + 1), 2 * HIDDEN_DIM), lambda i: (0, 0)),  # W1 block-diag
                pl.BlockSpec((2 * HIDDEN_DIM, 2 * EMBED_DIM), lambda i: (0, 0)),   # W2 block-diag
                pl.BlockSpec((1, 2 * EMBED_DIM), lambda i: (0, 0)),                # [b2|b2]
                pl.BlockSpec((2 * EMBED_DIM, 2 * EMBED_DIM), lambda i: (0, 0)),    # group matrix
            ],
            out_specs=pl.BlockSpec((bb2, 2 * EMBED_DIM), lambda i: (i, 0)),
        ),
        compiler_params=pltpu.CompilerParams(
            dimension_semantics=("parallel",)),
    )(x_wide, w1_wide, w2_wide, b2_wide, g_mat)
    # Un-pair the rows: (B/2, 128) -> (B, 64), contiguous => free.
    return out_wide.reshape(B, EMBED_DIM)


def init_params(key):
    # Deterministic init mimicking nn.Linear defaults (uniform +- 1/sqrt(fan_in)).
    k1, k2, k3, k4 = jax.random.split(key, 4)
    lim1 = 1.0 / jnp.sqrt(jnp.float32(INPUT_DIM))
    lim2 = 1.0 / jnp.sqrt(jnp.float32(HIDDEN_DIM))
    # Weights stored as (in, out) == W^T so the kernel computes x @ W^T + b like nn.Linear.
    w1 = jax.random.uniform(k1, (INPUT_DIM, HIDDEN_DIM), jnp.float32, -lim1, lim1)
    b1 = jax.random.uniform(k2, (HIDDEN_DIM,), jnp.float32, -lim1, lim1)
    w2 = jax.random.uniform(k3, (HIDDEN_DIM, EMBED_DIM), jnp.float32, -lim2, lim2)
    b2 = jax.random.uniform(k4, (EMBED_DIM,), jnp.float32, -lim2, lim2)
    return w1, b1, w2, b2


def reference_f32(x, w1, b1, w2, b2):
    h = jnp.maximum(x @ w1 + b1, 0.0)
    y = h @ w2 + b2
    n = jnp.sqrt(jnp.sum(y * y, axis=-1, keepdims=True))
    return y / jnp.maximum(n, 1e-12)


def reference_bf16(x, w1, b1, w2, b2):
    # Mirrors the kernel's dtype handling: bf16 MXU operands, f32 accumulation/epilogue.
    bf16, f32 = jnp.bfloat16, jnp.float32
    x_aug = jnp.concatenate([x, jnp.ones((x.shape[0], 1), f32)], axis=-1).astype(bf16)
    w1_aug = jnp.concatenate([w1, b1.reshape(1, -1)], axis=0).astype(bf16)
    h = jnp.maximum(jnp.dot(x_aug, w1_aug, preferred_element_type=f32), 0.0)
    y = jnp.dot(h.astype(bf16), w2.astype(bf16), preferred_element_type=f32) + b2.reshape(1, -1)
    sq = jnp.sum(y * y, axis=-1, keepdims=True)
    return y * lax.rsqrt(jnp.maximum(sq, 1e-24))


if __name__ == "__main__":
    key = jax.random.PRNGKey(0)
    kx, kp = jax.random.split(key)
    B = 512  # batch of subgoal states, each of dim 7 -> grid=(2,) with block_b=256
    x = jax.random.normal(kx, (B, INPUT_DIM), dtype=jnp.float32)
    w1, b1, w2, b2 = init_params(kp)

    out = subgoal_encoder(x, w1, b1, w2, b2)
    out = jax.block_until_ready(out)
    assert out.shape == (B, EMBED_DIM)

    ref_b = reference_bf16(x, w1, b1, w2, b2)   # same precision recipe as the kernel
    ref_f = reference_f32(x, w1, b1, w2, b2)    # exact PyTorch-module semantics in f32
    assert jnp.max(jnp.abs(out - ref_b)) < 1e-4, "mismatch vs precision-matched reference"
    assert jnp.max(jnp.abs(out - ref_f)) < 5e-2, "mismatch vs f32 reference"
    norms = jnp.sqrt(jnp.sum(out * out, axis=-1))
    assert jnp.max(jnp.abs(norms - 1.0)) < 1e-3, "outputs not unit-norm"

    print("KERNEL_OK")
</pallas_src>

<mosaic_0001>
module attributes {stable_mosaic.version = 11 : i64} {
  func.func @subgoal_encoder_kernel(%arg0: i32, %arg1: memref<128x16xbf16, #tpu.memory_space<vmem>>, %arg2: memref<16x256xbf16, #tpu.memory_space<vmem>>, %arg3: memref<256x128xbf16, #tpu.memory_space<vmem>>, %arg4: memref<1x128xf32, #tpu.memory_space<vmem>>, %arg5: memref<128x128xf32, #tpu.memory_space<vmem>>, %arg6: memref<128x128xf32, #tpu.memory_space<vmem>>) attributes {dimension_semantics = [#tpu.dimension_semantics<parallel>], iteration_bounds = array<i64: 2>, scalar_prefetch = 0 : i64, scratch_operands = 0 : i64, tpu.core_type = #tpu.core_type<tc>, window_params = [{transform_indices = @transform_0, window_bounds = array<i64: 128, 16>}, {pipeline_mode = #tpu.pipeline_mode<synchronous>, transform_indices = @transform_1, window_bounds = array<i64: 16, 256>}, {pipeline_mode = #tpu.pipeline_mode<synchronous>, transform_indices = @transform_2, window_bounds = array<i64: 256, 128>}, {pipeline_mode = #tpu.pipeline_mode<synchronous>, transform_indices = @transform_3, window_bounds = array<i64: 1, 128>}, {pipeline_mode = #tpu.pipeline_mode<synchronous>, transform_indices = @transform_4, window_bounds = array<i64: 128, 128>}, {transform_indices = @transform_5, window_bounds = array<i64: 128, 128>}]} {
    %c0 = arith.constant 0 : index
    %c0_0 = arith.constant 0 : index
    %0 = vector.load %arg1[%c0, %c0_0] : memref<128x16xbf16, #tpu.memory_space<vmem>>, vector<128x16xbf16>
    %c0_1 = arith.constant 0 : index
    %c0_2 = arith.constant 0 : index
    %1 = vector.load %arg2[%c0_1, %c0_2] : memref<16x256xbf16, #tpu.memory_space<vmem>>, vector<16x256xbf16>
    %cst = arith.constant dense<0.000000e+00> : vector<128x256xf32>
    %2 = tpu.matmul %0, %1, %cst {dimension_numbers = #tpu.dot_dimension_numbers<[1], [0], [0], [1], [0, 0, 1, 1], [], []>} : vector<128x16xbf16>, vector<16x256xbf16>, vector<128x256xf32> -> vector<128x256xf32>
    %cst_3 = arith.constant 0.000000e+00 : f32
    %3 = vector.broadcast %cst_3 : f32 to vector<128x256xf32>
    %4 = arith.maximumf %2, %3 : vector<128x256xf32>
    %5 = arith.truncf %4 : vector<128x256xf32> to vector<128x256xbf16>
    %c0_4 = arith.constant 0 : index
    %c0_5 = arith.constant 0 : index
    %6 = vector.load %arg3[%c0_4, %c0_5] : memref<256x128xbf16, #tpu.memory_space<vmem>>, vector<256x128xbf16>
    %cst_6 = arith.constant dense<0.000000e+00> : vector<128x128xf32>
    %7 = tpu.matmul %5, %6, %cst_6 {dimension_numbers = #tpu.dot_dimension_numbers<[1], [0], [0], [1], [0, 0, 1, 1], [], []>} : vector<128x256xbf16>, vector<256x128xbf16>, vector<128x128xf32> -> vector<128x128xf32>
    %c0_7 = arith.constant 0 : index
    %c0_8 = arith.constant 0 : index
    %8 = vector.load %arg4[%c0_7, %c0_8] : memref<1x128xf32, #tpu.memory_space<vmem>>, vector<1x128xf32>
    %9 = vector.broadcast %8 : vector<1x128xf32> to vector<128x128xf32>
    %10 = arith.addf %7, %9 : vector<128x128xf32>
    %11 = arith.mulf %10, %10 : vector<128x128xf32>
    %c0_9 = arith.constant 0 : index
    %c0_10 = arith.constant 0 : index
    %12 = vector.load %arg5[%c0_9, %c0_10] : memref<128x128xf32, #tpu.memory_space<vmem>>, vector<128x128xf32>
    %cst_11 = arith.constant dense<0.000000e+00> : vector<128x128xf32>
    %13 = tpu.matmul %11, %12, %cst_11 {dimension_numbers = #tpu.dot_dimension_numbers<[1], [0], [0], [1], [0, 0, 1, 1], [], []>} : vector<128x128xf32>, vector<128x128xf32>, vector<128x128xf32> -> vector<128x128xf32>
    %cst_12 = arith.constant 1.000000e-24 : f32
    %14 = vector.broadcast %cst_12 : f32 to vector<128x128xf32>
    %15 = arith.maximumf %13, %14 : vector<128x128xf32>
    %16 = math.rsqrt %15 : vector<128x128xf32>
    %17 = arith.mulf %10, %16 : vector<128x128xf32>
    %c0_13 = arith.constant 0 : index
    %c0_14 = arith.constant 0 : index
    %18 = vector.load %arg6[%c0_13, %c0_14] : memref<128x128xf32, #tpu.memory_space<vmem>>, vector<128x128xf32>
    tpu.vector_store %arg6[%c0_13, %c0_14], %17 {strides = array<i32>} : memref<128x128xf32, #tpu.memory_space<vmem>>, vector<128x128xf32>,
    return
  }
  func.func @transform_0(%arg0: i32) -> (i32, i32) {
    %c0_i32 = arith.constant 0 : i32
    %c0_i32_0 = arith.constant 0 : i32
    return %arg0, %c0_i32 : i32, i32
  }
  func.func @transform_1(%arg0: i32) -> (i32, i32) {
    %c0_i32 = arith.constant 0 : i32
    %c0_i32_0 = arith.constant 0 : i32
    %c0_i32_1 = arith.constant 0 : i32
    return %c0_i32, %c0_i32_0 : i32, i32
  }
  func.func @transform_2(%arg0: i32) -> (i32, i32) {
    %c0_i32 = arith.constant 0 : i32
    %c0_i32_0 = arith.constant 0 : i32
    %c0_i32_1 = arith.constant 0 : i32
    return %c0_i32, %c0_i32_0 : i32, i32
  }
  func.func @transform_3(%arg0: i32) -> (i32, i32) {
    %c0_i32 = arith.constant 0 : i32
    %c0_i32_0 = arith.constant 0 : i32
    %c0_i32_1 = arith.constant 0 : i32
    return %c0_i32, %c0_i32_0 : i32, i32
  }
  func.func @transform_4(%arg0: i32) -> (i32, i32) {
    %c0_i32 = arith.constant 0 : i32
    %c0_i32_0 = arith.constant 0 : i32
    %c0_i32_1 = arith.constant 0 : i32
    return %c0_i32, %c0_i32_0 : i32, i32
  }
  func.func @transform_5(%arg0: i32) -> (i32, i32) {
    %c0_i32 = arith.constant 0 : i32
    %c0_i32_0 = arith.constant 0 : i32
    return %arg0, %c0_i32 : i32, i32
  }
}

</mosaic_0001>

<llo_original>
// kernel: tpu_custom_call.1
$region0: #{tpu_custom_call.1}
  #allocation0 [shape = 'u32[]', space=smem, size = 0x4, offset = 0x4, fixed_abs, tag = 'smem constant byte address 0x4 - core index']
  #allocation1 [shape = 'u32[144,128]{1,0:T(1,128)}', space=vmem, size = 0x12000, scoped, tag = 'internal scratch']
  %s0 = inlined_call_operand.vmem [shape: bf16[256,16], index: 0, kind: input, shape index: {}]
  %s1 = inlined_call_operand.vmem [shape: bf16[16,256], index: 1, kind: input, shape index: {}]
  %s2 = inlined_call_operand.vmem [shape: bf16[256,128], index: 2, kind: input, shape index: {}]
  %s3 = inlined_call_operand.vmem [shape: f32[1,128], index: 3, kind: input, shape index: {}]
  %s4 = inlined_call_operand.hbm [shape: f32[128,128], index: 4, kind: input, shape index: {}]
  %s5 = inlined_call_operand.hbm [shape: f32[256,128], index: 5, kind: output, shape index: {}]
  %s6 = sld [smem:[#allocation0]]
  $region57: #{tpu_custom_call.1} parent=0
    _
  %s8 = ssub.s32 1, %s6
  %s9 = scalar_select 0, %s8, %s6
  $region1: #{tpu_custom_call.1} parent=0
    #allocation2 [shape = 'u8[65536]{0}', space=vmem, size = 0x10000, scoped, tag = 'input window, operand 4, single buffered']
    #allocation3 [shape = 's32[2]{0}', space=sflag, size = 0x8, scoped, tag = 'scoped memory for tpu_custom_call.1']
    #allocation4 [shape = 's32[2]{0}', space=sflag, size = 0x8, scoped, tag = 'scoped memory for tpu_custom_call.1']
    #allocation5 [shape = 'u8[131072]{0}', space=vmem, size = 0x20000, scoped, tag = 'output window, operand 0']
    %10 = vsyncpa [#allocation3], 0
    %11 = vsyncpa [#allocation4], 0
    %s12 = scalar_lea.sflag [#allocation4], 1
    %13 = vsyncpa %s12, 0
    loop: start=0, step=1, limit=4
    $region2: #{tpu_custom_call.1} parent=1 // loop_pre_header
      _
    $region3: #{tpu_custom_call.1} parent=1 // loop_header
      %s15 = sphi 0, %s19
      %p16 = scmp.ge.s32.totalorder %s15, 4
      %s25 = sphi 0, %s27
      %s28 = sphi 0, %s25
      %s29 = sphi 0, %s28
      %s45 = sphi 0, %s29
      %s49 = sphi 0, %s49
      %s51 = sphi 0, %s49
      %s52 = sphi 0, %s51
      %s66 = sphi 0, %s52
      %s70 = sphi 0, %s70
      %s72 = sphi 0, %s70
      %s73 = sphi 0, %s72
      %s87 = sphi 0, %s73
      %s91 = sphi 0, %s91
      %s93 = sphi 0, %s91
      %s94 = sphi 0, %s93
      %s108 = sphi 0, %s94
      %s112 = sphi 0, %s112
      %s114 = sphi 0, %s112
      %s115 = sphi 0, %s114
      %s129 = sphi 0, %s115
      %s135 = sphi 0, %s137
      %s138 = sphi 0, %s135
      %s139 = sphi 0, %s138
      %s155 = sphi 0, %s139
    $region4: #{tpu_custom_call.1} parent=1 // loop_header_branch
      %18 = sbr.rel (%p16) target = $region8
    $region5: #{tpu_custom_call.1} parent=1 // loop_body
      %s20 = ssub.s32 %s15, 1
      %s21 = ssub.s32 %s15, 2
      %s22 = sadd.s32 %s15, 1
      %s23 = ssub.s32 %s15, %s22
      %p24 = scmp.eq.s32.totalorder %s23, 0
      %s26 = sadd.s32 %s25, 1
      %s27 = scalar_select %p24, %s25, %s26
      %p30 = pneg %p24
      %p31 = scmp.eq.s32.totalorder %s15, 1
      %p32 = por %p30, %p31
      %p33 = scmp.ne.s32.totalorder %s25, %s28
      %p34 = scmp.eq.s32.totalorder %s15, 0
      %p35 = por %p33, %p34
      %p36 = scmp.ne.s32.totalorder %s25, %s28
      %p37 = scmp.eq.s32.totalorder %s20, 1
      %p38 = por %p36, %p37
      %p39 = scmp.ne.s32.totalorder %s28, %s29
      %p40 = scmp.eq.s32.totalorder %s20, 0
      %p41 = por %p39, %p40
      %p42 = scmp.ne.s32.totalorder %s28, %s29
      %p43 = scmp.eq.s32.totalorder %s21, 1
      %p44 = por %p42, %p43
      %p46 = scmp.ne.s32.totalorder %s29, %s45
      %p47 = scmp.eq.s32.totalorder %s21, 0
      %p48 = por %p46, %p47
      %s50 = sadd.s32 %s49, 1
      %p53 = scmp.eq.s32.totalorder %s15, 1
      %p54 = scmp.ne.s32.totalorder %s49, %s51
      %p55 = scmp.eq.s32.totalorder %s15, 0
      %p56 = por %p54, %p55
      %p57 = scmp.ne.s32.totalorder %s49, %s51
      %p58 = scmp.eq.s32.totalorder %s20, 1
      %p59 = por %p57, %p58
      %p60 = scmp.ne.s32.totalorder %s51, %s52
      %p61 = scmp.eq.s32.totalorder %s20, 0
      %p62 = por %p60, %p61
      %p63 = scmp.ne.s32.totalorder %s51, %s52
      %p64 = scmp.eq.s32.totalorder %s21, 1
      %p65 = por %p63, %p64
      %p67 = scmp.ne.s32.totalorder %s52, %s66
      %p68 = scmp.eq.s32.totalorder %s21, 0
      %p69 = por %p67, %p68
      %s71 = sadd.s32 %s70, 1
      %p74 = scmp.eq.s32.totalorder %s15, 1
      %p75 = scmp.ne.s32.totalorder %s70, %s72
      %p76 = scmp.eq.s32.totalorder %s15, 0
      %p77 = por %p75, %p76
      %p78 = scmp.ne.s32.totalorder %s70, %s72
      %p79 = scmp.eq.s32.totalorder %s20, 1
      %p80 = por %p78, %p79
      %p81 = scmp.ne.s32.totalorder %s72, %s73
      %p82 = scmp.eq.s32.totalorder %s20, 0
      %p83 = por %p81, %p82
      %p84 = scmp.ne.s32.totalorder %s72, %s73
      %p85 = scmp.eq.s32.totalorder %s21, 1
      %p86 = por %p84, %p85
      %p88 = scmp.ne.s32.totalorder %s73, %s87
      %p89 = scmp.eq.s32.totalorder %s21, 0
      %p90 = por %p88, %p89
      %s92 = sadd.s32 %s91, 1
      %p95 = scmp.eq.s32.totalorder %s15, 1
      %p96 = scmp.ne.s32.totalorder %s91, %s93
      %p97 = scmp.eq.s32.totalorder %s15, 0
      %p98 = por %p96, %p97
      %p99 = scmp.ne.s32.totalorder %s91, %s93
      %p100 = scmp.eq.s32.totalorder %s20, 1
      %p101 = por %p99, %p100
      %p102 = scmp.ne.s32.totalorder %s93, %s94
      %p103 = scmp.eq.s32.totalorder %s20, 0
      %p104 = por %p102, %p103
      %p105 = scmp.ne.s32.totalorder %s93, %s94
      %p106 = scmp.eq.s32.totalorder %s21, 1
      %p107 = por %p105, %p106
      %p109 = scmp.ne.s32.totalorder %s94, %s108
      %p110 = scmp.eq.s32.totalorder %s21, 0
      %p111 = por %p109, %p110
      %s113 = sadd.s32 %s112, 1
      %p116 = scmp.eq.s32.totalorder %s15, 1
      %p117 = scmp.ne.s32.totalorder %s112, %s114
      %p118 = scmp.eq.s32.totalorder %s15, 0
      %p119 = por %p117, %p118
      %p120 = scmp.ne.s32.totalorder %s112, %s114
      %p121 = scmp.eq.s32.totalorder %s20, 1
      %p122 = por %p120, %p121
      %p123 = scmp.ne.s32.totalorder %s114, %s115
      %p124 = scmp.eq.s32.totalorder %s20, 0
      %p125 = por %p123, %p124
      %p126 = scmp.ne.s32.totalorder %s114, %s115
      %p127 = scmp.eq.s32.totalorder %s21, 1
      %p128 = por %p126, %p127
      %p130 = scmp.ne.s32.totalorder %s115, %s129
      %p131 = scmp.eq.s32.totalorder %s21, 0
      %p132 = por %p130, %p131
      %s133 = ssub.s32 %s15, %s22
      %p134 = scmp.eq.s32.totalorder %s133, 0
      %s136 = sadd.s32 %s135, 1
      %s137 = scalar_select %p134, %s135, %s136
      %p140 = pneg %p134
      %p141 = scmp.eq.s32.totalorder %s15, 1
      %p142 = por %p140, %p141
      %p143 = scmp.ne.s32.totalorder %s135, %s138
      %p144 = scmp.eq.s32.totalorder %s15, 0
      %p145 = por %p143, %p144
      %p146 = scmp.ne.s32.totalorder %s135, %s138
      %p147 = scmp.eq.s32.totalorder %s20, 1
      %p148 = por %p146, %p147
      %p149 = scmp.ne.s32.totalorder %s138, %s139
      %p150 = scmp.eq.s32.totalorder %s20, 0
      %p151 = por %p149, %p150
      %p152 = scmp.ne.s32.totalorder %s138, %s139
      %p153 = scmp.eq.s32.totalorder %s21, 1
      %p154 = por %p152, %p153
      %p156 = scmp.ne.s32.totalorder %s139, %s155
      %p157 = scmp.eq.s32.totalorder %s21, 0
      %p158 = por %p156, %p157
      %p159 = scmp.le.s32.totalorder 1, %s15
      %p160 = scmp.lt.s32.totalorder %s15, 3
      %p161 = pnand %p159, %p160
      %p162 = pneg %p161
      // Predicated region
      $region9: #{tpu_custom_call.1} parent=5 // pred_check
        _
      $region10: #{tpu_custom_call.1} parent=5 // pred_check_branch
        %164 = sbr.rel (%p161) target = $region12
      $region11: #{tpu_custom_call.1} parent=5 // pred_region
        %s165 = ssub.s32 %s15, 1
        // Predicated region
        $region13: #{tpu_custom_call.1} parent=11 // pred_check
          %p166 = pneg %p62
        $region14: #{tpu_custom_call.1} parent=11 // pred_check_branch
          %168 = sbr.rel (%p166) target = $region16
        $region15: #{tpu_custom_call.1} parent=11 // pred_region
          _
        $region16: #{tpu_custom_call.1} parent=11 // pred_fallthru
          _
        // Predicated region
        $region17: #{tpu_custom_call.1} parent=11 // pred_check
          %p169 = pneg %p83
        $region18: #{tpu_custom_call.1} parent=11 // pred_check_branch
          %171 = sbr.rel (%p169) target = $region20
        $region19: #{tpu_custom_call.1} parent=11 // pred_region
          _
        $region20: #{tpu_custom_call.1} parent=11 // pred_fallthru
          _
        // Predicated region
        $region21: #{tpu_custom_call.1} parent=11 // pred_check
          %p172 = pneg %p104
        $region22: #{tpu_custom_call.1} parent=11 // pred_check_branch
          %174 = sbr.rel (%p172) target = $region24
        $region23: #{tpu_custom_call.1} parent=11 // pred_region
          _
        $region24: #{tpu_custom_call.1} parent=11 // pred_fallthru
          _
        // Predicated region
        $region25: #{tpu_custom_call.1} parent=11 // pred_check
          %p175 = pneg %p125
        $region26: #{tpu_custom_call.1} parent=11 // pred_check_branch
          %177 = sbr.rel (%p175) target = $region28
        $region27: #{tpu_custom_call.1} parent=11 // pred_region
          %s179 = ssub.s32 2048, 2048
          %180 = vsyncadd [#allocation3], %s179
          %s181 = sshll.u32 [#allocation2], 4
          %s182 = int_to_ptr.vmem [resolvable:$true] %s181
          %187 = dma.hbm_to_vmem [thread:$0]  %s4, 2048, %s182, [#allocation3], 128, 128, 8
        $region28: #{tpu_custom_call.1} parent=11 // pred_fallthru
          _
      $region12: #{tpu_custom_call.1} parent=5 // pred_fallthru
        _
      %p188 = scmp.lt.s32.totalorder %s15, 2
      // Predicated region
      $region29: #{tpu_custom_call.1} parent=5 // pred_check
        %p189 = pneg %p188
      $region30: #{tpu_custom_call.1} parent=5 // pred_check_branch
        %191 = sbr.rel (%p189) target = $region32
      $region31: #{tpu_custom_call.1} parent=5 // pred_region
        // Predicated region
        $region33: #{tpu_custom_call.1} parent=31 // pred_check
          %p192 = pneg %p35
        $region34: #{tpu_custom_call.1} parent=31 // pred_check_branch
          %194 = sbr.rel (%p192) target = $region36
        $region35: #{tpu_custom_call.1} parent=31 // pred_region
          %s195 = smul.u32 16, %s15
          %p196 = scmp.lt.s32.totalorder %s195, 31
          %s197 = scalar_select %p196, %s195, 31
          %s198 = smul.addr %s197, 4
          %s199 = scalar_lea.vmem %s0, %s198
          %s200 = smul.u32 16, %s15
        $region36: #{tpu_custom_call.1} parent=31 // pred_fallthru
          _
      $region32: #{tpu_custom_call.1} parent=5 // pred_fallthru
        _
      %p201 = scmp.le.s32.totalorder 1, %s15
      %p202 = scmp.lt.s32.totalorder %s15, 3
      %p203 = pnand %p201, %p202
      %p204 = pneg %p203
      // Predicated region
      $region37: #{tpu_custom_call.1} parent=5 // pred_check
        _
      $region38: #{tpu_custom_call.1} parent=5 // pred_check_branch
        %206 = sbr.rel (%p203) target = $region40
      $region39: #{tpu_custom_call.1} parent=5 // pred_region
        %s207 = ssub.s32 %s15, 1
        // Predicated region
        $region41: #{tpu_custom_call.1} parent=39 // pred_check
          %p208 = pneg %p125
        $region42: #{tpu_custom_call.1} parent=39 // pred_check_branch
          %210 = sbr.rel (%p208) target = $region44
        $region43: #{tpu_custom_call.1} parent=39 // pred_region
          %211 = dma.done [#allocation3], 2048
        $region44: #{tpu_custom_call.1} parent=39 // pred_fallthru
          _
        %s212 = smul.u32 16, %s20
        %p213 = scmp.lt.s32.totalorder %s212, 31
        %s214 = scalar_select %p213, %s212, 31
        %s215 = smul.addr %s214, 4
        %s216 = scalar_lea.vmem %s0, %s215
        %p217 = pneg %p41
        %p218 = pneg %p38
        %p219 = pneg %p62
        %p220 = pneg %p59
        %p221 = pneg %p83
        %p222 = pneg %p80
        %p223 = pneg %p104
        %p224 = pneg %p101
        %p225 = pneg %p125
        %p226 = pneg %p122
        %p227 = pneg %p151
        %p228 = pneg %p148
        %s229 = sand.u32 %s138, 1
        %s230 = scalar_lea.sflag [#allocation4], %s229
        %s231 = sand.u32 %s138, 1
        %s232 = smul.addr %s231, 128
        %s233 = scalar_lea.vmem [#allocation5], %s232
        %s234 = smul.u32 16, %s20
        %p235 = scmp.lt.s32.totalorder %s234, 31
        %s236 = scalar_select %p235, %s234, 31
        %s237 = smul.addr %s236, 4
        %s238 = scalar_lea.vmem %s0, %s237
        %s239 = smul.u32 16, %s20
        %s240 = smul.u32 16, %s20
        %v242 = vld [vmem:[%s238] sm:$0xf]
        %v243 = vld [vmem:[%s238 + $0x4] sm:$0xf]
        %v244 = vld [vmem:[%s238 + $0x8] sm:$0xf]
        %v245 = vld [vmem:[%s238 + $0xc] sm:$0xf]
        %v246 = vld [vmem:[%s238 + $0x10] sm:$0xf]
        %v247 = vld [vmem:[%s238 + $0x14] sm:$0xf]
        %v248 = vld [vmem:[%s238 + $0x18] sm:$0xf]
        %v249 = vld [vmem:[%s238 + $0x1c] sm:$0xf]
        %v250 = vld [vmem:[%s238 + $0x20] sm:$0xf]
        %v251 = vld [vmem:[%s238 + $0x24] sm:$0xf]
        %v252 = vld [vmem:[%s238 + $0x28] sm:$0xf]
        %v253 = vld [vmem:[%s238 + $0x2c] sm:$0xf]
        %v254 = vld [vmem:[%s238 + $0x30] sm:$0xf]
        %v255 = vld [vmem:[%s238 + $0x34] sm:$0xf]
        %v256 = vld [vmem:[%s238 + $0x38] sm:$0xf]
        %v257 = vld [vmem:[%s238 + $0x3c] sm:$0xf]
        %v258 = vld [vmem:[%s1] sm:$0xff]
        %v259 = vld [vmem:[%s1 + $0x8] sm:$0xff]
        %v276 = vunpack.c.l.b16 %v242
        %v277 = vunpack.c.l.b16 %v243
        %v278 = vunpack.c.l.b16 %v244
        %v279 = vunpack.c.l.b16 %v245
        %v280 = vunpack.c.l.b16 %v246
        %v281 = vunpack.c.l.b16 %v247
        %v282 = vunpack.c.l.b16 %v248
        %v283 = vunpack.c.l.b16 %v249
        %v284 = vunpack.c.l.b16 %v250
        %v285 = vunpack.c.l.b16 %v251
        %v286 = vunpack.c.l.b16 %v252
        %v287 = vunpack.c.l.b16 %v253
        %v288 = vunpack.c.l.b16 %v254
        %v289 = vunpack.c.l.b16 %v255
        %v290 = vunpack.c.l.b16 %v256
        %v291 = vunpack.c.l.b16 %v257
        %v292 = vpack.c.b16 %v277, %v276
        %v293 = vpack.c.b16 %v279, %v278
        %v294 = vpack.c.b16 %v281, %v280
        %v295 = vpack.c.b16 %v283, %v282
        %v296 = vpack.c.b16 %v285, %v284
        %v297 = vpack.c.b16 %v287, %v286
        %v298 = vpack.c.b16 %v289, %v288
        %v299 = vpack.c.b16 %v291, %v290
        %v302 = vunpack.c.l.b16 %v258
        %v303 = vunpack.c.h.b16 %v258
        %v304 = vunpack.c.l.b16 %v259
        %v305 = vunpack.c.h.b16 %v259
        %v306 = vpack.c.b16 %v304, %v302
        %v307 = vpack.c.b16 %v305, %v303
        %vm310 = vcmask 130048
        %v312 = vsel %vm310, %v292, 0
        %v315 = vsel %vm310, %v293, 0
        %v318 = vsel %vm310, %v294, 0
        %v321 = vsel %vm310, %v295, 0
        %v324 = vsel %vm310, %v296, 0
        %v327 = vsel %vm310, %v297, 0
        %v330 = vsel %vm310, %v298, 0
        %v333 = vsel %vm310, %v299, 0
        %335 = vmatprep.subr.bf16.mxu0 0
        %336 = vmatpush1.bf16.msra.mxu0 0
        %337 = vmatprep.subr.bf16.mxu0 0
        %338 = vmatpush1.bf16.msra.mxu0 0
        %339 = vmatprep.subr.bf16.mxu0 0
        %340 = vmatpush1.bf16.msra.mxu0 0
        %341 = vmatprep.subr.bf16.mxu0 0
        %342 = vmatpush1.bf16.msra.mxu0 0
        %343 = vmatprep.subr.bf16.mxu0 0
        %344 = vmatpush1.bf16.msra.mxu0 0
        %345 = vmatprep.subr.bf16.mxu0 0
        %346 = vmatpush1.bf16.msra.mxu0 0
        %347 = vmatprep.subr.bf16.mxu0 0
        %348 = vmatpush1.bf16.msra.mxu0 0
        %349 = vmatprep.subr.bf16.mxu0 %v307
        %350 = vmatpush1.bf16.msra.mxu0 %v306
        %351 = vmatprep.subr.bf16.mxu0 0
        %352 = vmatpush2.bf16.msra.mxu0 0
        %353 = vmatprep.subr.bf16.mxu0 0
        %354 = vmatpush2.bf16.msra.mxu0 0
        %355 = vmatprep.subr.bf16.mxu0 0
        %356 = vmatpush2.bf16.msra.mxu0 0
        %357 = vmatprep.subr.bf16.mxu0 0
        %358 = vmatpush2.bf16.msra.mxu0 0
        %359 = vmatprep.subr.bf16.mxu0 0
        %360 = vmatpush2.bf16.msra.mxu0 0
        %361 = vmatprep.subr.bf16.mxu0 0
        %362 = vmatpush2.bf16.msra.mxu0 0
        %363 = vmatprep.subr.bf16.mxu0 0
        %364 = vmatpush2.bf16.msra.mxu0 0
        %365 = vmatprep.subr.bf16.mxu0 0
        %366 = vmatpush2.bf16.msra.mxu0 0
        %367 = vmatprep.mubr.bf16.mxu0 0
        %368 = vmatmul.mubr.bf16.gmra.mxu0 %v312
        %v369 = vpop.f32.mrf.mxu0
        %v370 = vadd.f32 0.0, %v369
        %v371 = vpop.f32.mrf.mxu0
        %v372 = vadd.f32 0.0, %v371
        %v373 = vpop.f32.mrf.mxu0
        %v374 = vadd.f32 0.0, %v373
        %v375 = vpop.f32.mrf.mxu0
        %v376 = vadd.f32 0.0, %v375
        %377 = vmatprep.mubr.bf16.mxu0 0
        %378 = vmatmul.mubr.bf16.gmra.mxu0 %v315
        %v379 = vpop.f32.mrf.mxu0
        %v380 = vadd.f32 0.0, %v379
        %v381 = vpop.f32.mrf.mxu0
        %v382 = vadd.f32 0.0, %v381
        %v383 = vpop.f32.mrf.mxu0
        %v384 = vadd.f32 0.0, %v383
        %v385 = vpop.f32.mrf.mxu0
        %v386 = vadd.f32 0.0, %v385
        %387 = vmatprep.mubr.bf16.mxu0 0
        %388 = vmatmul.mubr.bf16.gmra.mxu0 %v318
        %v389 = vpop.f32.mrf.mxu0
        %v390 = vadd.f32 0.0, %v389
        %v391 = vpop.f32.mrf.mxu0
        %v392 = vadd.f32 0.0, %v391
        %v393 = vpop.f32.mrf.mxu0
        %v394 = vadd.f32 0.0, %v393
        %v395 = vpop.f32.mrf.mxu0
        %v396 = vadd.f32 0.0, %v395
        %397 = vmatprep.mubr.bf16.mxu0 0
        %398 = vmatmul.mubr.bf16.gmra.mxu0 %v321
        %v399 = vpop.f32.mrf.mxu0
        %v400 = vadd.f32 0.0, %v399
        %v401 = vpop.f32.mrf.mxu0
        %v402 = vadd.f32 0.0, %v401
        %v403 = vpop.f32.mrf.mxu0
        %v404 = vadd.f32 0.0, %v403
        %v405 = vpop.f32.mrf.mxu0
        %v406 = vadd.f32 0.0, %v405
        %407 = vmatprep.mubr.bf16.mxu0 0
        %408 = vmatmul.mubr.bf16.gmra.mxu0 %v324
        %v409 = vpop.f32.mrf.mxu0
        %v410 = vadd.f32 0.0, %v409
        %v411 = vpop.f32.mrf.mxu0
        %v412 = vadd.f32 0.0, %v411
        %v413 = vpop.f32.mrf.mxu0
        %v414 = vadd.f32 0.0, %v413
        %v415 = vpop.f32.mrf.mxu0
        %v416 = vadd.f32 0.0, %v415
        %417 = vmatprep.mubr.bf16.mxu0 0
        %418 = vmatmul.mubr.bf16.gmra.mxu0 %v327
        %v419 = vpop.f32.mrf.mxu0
        %v420 = vadd.f32 0.0, %v419
        %v421 = vpop.f32.mrf.mxu0
        %v422 = vadd.f32 0.0, %v421
        %v423 = vpop.f32.mrf.mxu0
        %v424 = vadd.f32 0.0, %v423
        %v425 = vpop.f32.mrf.mxu0
        %v426 = vadd.f32 0.0, %v425
        %427 = vmatprep.mubr.bf16.mxu0 0
        %428 = vmatmul.mubr.bf16.gmra.mxu0 %v330
        %v429 = vpop.f32.mrf.mxu0
        %v430 = vadd.f32 0.0, %v429
        %v431 = vpop.f32.mrf.mxu0
        %v432 = vadd.f32 0.0, %v431
        %v433 = vpop.f32.mrf.mxu0
        %v434 = vadd.f32 0.0, %v433
        %v435 = vpop.f32.mrf.mxu0
        %v436 = vadd.f32 0.0, %v435
        %437 = vmatprep.mubr.bf16.mxu0 0
        %438 = vmatmul.mubr.bf16.gmra.mxu0 %v333
        %v439 = vpop.f32.mrf.mxu0
        %v440 = vadd.f32 0.0, %v439
        %v441 = vpop.f32.mrf.mxu0
        %v442 = vadd.f32 0.0, %v441
        %v443 = vpop.f32.mrf.mxu0
        %v444 = vadd.f32 0.0, %v443
        %v445 = vpop.f32.mrf.mxu0
        %v446 = vadd.f32 0.0, %v445
        %447 = vdwg.mxu0
        %v448 = vmax.f32 %v370, 0.0
        %v449 = vmax.f32 %v372, 0.0
        %v450 = vmax.f32 %v374, 0.0
        %v451 = vmax.f32 %v376, 0.0
        %v452 = vmax.f32 %v380, 0.0
        %v453 = vmax.f32 %v382, 0.0
        %v454 = vmax.f32 %v384, 0.0
        %v455 = vmax.f32 %v386, 0.0
        %v456 = vmax.f32 %v390, 0.0
        %v457 = vmax.f32 %v392, 0.0
        %v458 = vmax.f32 %v394, 0.0
        %v459 = vmax.f32 %v396, 0.0
        %v460 = vmax.f32 %v400, 0.0
        %v461 = vmax.f32 %v402, 0.0
        %v462 = vmax.f32 %v404, 0.0
        %v463 = vmax.f32 %v406, 0.0
        %v464 = vmax.f32 %v410, 0.0
        %v465 = vmax.f32 %v412, 0.0
        %v466 = vmax.f32 %v414, 0.0
        %v467 = vmax.f32 %v416, 0.0
        %v468 = vmax.f32 %v420, 0.0
        %v469 = vmax.f32 %v422, 0.0
        %v470 = vmax.f32 %v424, 0.0
        %v471 = vmax.f32 %v426, 0.0
        %v472 = vmax.f32 %v430, 0.0
        %v473 = vmax.f32 %v432, 0.0
        %v474 = vmax.f32 %v434, 0.0
        %v475 = vmax.f32 %v436, 0.0
        %v476 = vmax.f32 %v440, 0.0
        %v477 = vmax.f32 %v442, 0.0
        %v478 = vmax.f32 %v444, 0.0
        %v479 = vmax.f32 %v446, 0.0
        %v480 = vpack.c.bf16 %v450, %v448
        %v481 = vpack.c.bf16 %v451, %v449
        %v482 = vpack.c.bf16 %v454, %v452
        %v483 = vpack.c.bf16 %v455, %v453
        %v484 = vpack.c.bf16 %v458, %v456
        %v485 = vpack.c.bf16 %v459, %v457
        %v486 = vpack.c.bf16 %v462, %v460
        %v487 = vpack.c.bf16 %v463, %v461
        %v488 = vpack.c.bf16 %v466, %v464
        %v489 = vpack.c.bf16 %v467, %v465
        %v490 = vpack.c.bf16 %v470, %v468
        %v491 = vpack.c.bf16 %v471, %v469
        %v492 = vpack.c.bf16 %v474, %v472
        %v493 = vpack.c.bf16 %v475, %v473
        %v494 = vpack.c.bf16 %v478, %v476
        %v495 = vpack.c.bf16 %v479, %v477
        %v496 = vld [vmem:[%s2] sm:$0xf]
        %v497 = vld [vmem:[%s2 + $0x4] sm:$0xf]
        %v498 = vld [vmem:[%s2 + $0x8] sm:$0xf]
        %v499 = vld [vmem:[%s2 + $0xc] sm:$0xf]
        %v500 = vld [vmem:[%s2 + $0x10] sm:$0xf]
        %v501 = vld [vmem:[%s2 + $0x14] sm:$0xf]
        %v502 = vld [vmem:[%s2 + $0x18] sm:$0xf]
        %v503 = vld [vmem:[%s2 + $0x1c] sm:$0xf]
        %v504 = vld [vmem:[%s2 + $0x20] sm:$0xf]
        %v505 = vld [vmem:[%s2 + $0x24] sm:$0xf]
        %v506 = vld [vmem:[%s2 + $0x28] sm:$0xf]
        %v507 = vld [vmem:[%s2 + $0x2c] sm:$0xf]
        %v508 = vld [vmem:[%s2 + $0x30] sm:$0xf]
        %v509 = vld [vmem:[%s2 + $0x34] sm:$0xf]
        %v510 = vld [vmem:[%s2 + $0x38] sm:$0xf]
        %v511 = vld [vmem:[%s2 + $0x3c] sm:$0xf]
        %v512 = vld [vmem:[%s2 + $0x40] sm:$0xf]
        %v513 = vld [vmem:[%s2 + $0x44] sm:$0xf]
        %v514 = vld [vmem:[%s2 + $0x48] sm:$0xf]
        %v515 = vld [vmem:[%s2 + $0x4c] sm:$0xf]
        %v516 = vld [vmem:[%s2 + $0x50] sm:$0xf]
        %v517 = vld [vmem:[%s2 + $0x54] sm:$0xf]
        %v518 = vld [vmem:[%s2 + $0x58] sm:$0xf]
        %v519 = vld [vmem:[%s2 + $0x5c] sm:$0xf]
        %v520 = vld [vmem:[%s2 + $0x60] sm:$0xf]
        %v521 = vld [vmem:[%s2 + $0x64] sm:$0xf]
        %v522 = vld [vmem:[%s2 + $0x68] sm:$0xf]
        %v523 = vld [vmem:[%s2 + $0x6c] sm:$0xf]
        %v524 = vld [vmem:[%s2 + $0x70] sm:$0xf]
        %v525 = vld [vmem:[%s2 + $0x74] sm:$0xf]
        %v526 = vld [vmem:[%s2 + $0x78] sm:$0xf]
        %v527 = vld [vmem:[%s2 + $0x7c] sm:$0xf]
        %v528 = vld [vmem:[%s3] sm:$0x1]
        %v530 = vlaneseq
        %v531 = vshrl.u32 %v530, 7
        %v532 = vsub.s32 0, %v531
        %v533 = vrot.slane %v528, %v532
        %v567 = vunpack.c.l.b16 %v496
        %v568 = vunpack.c.l.b16 %v497
        %v569 = vunpack.c.l.b16 %v498
        %v570 = vunpack.c.l.b16 %v499
        %v571 = vunpack.c.l.b16 %v500
        %v572 = vunpack.c.l.b16 %v501
        %v573 = vunpack.c.l.b16 %v502
        %v574 = vunpack.c.l.b16 %v503
        %v575 = vunpack.c.l.b16 %v504
        %v576 = vunpack.c.l.b16 %v505
        %v577 = vunpack.c.l.b16 %v506
        %v578 = vunpack.c.l.b16 %v507
        %v579 = vunpack.c.l.b16 %v508
        %v580 = vunpack.c.l.b16 %v509
        %v581 = vunpack.c.l.b16 %v510
        %v582 = vunpack.c.l.b16 %v511
        %v583 = vunpack.c.l.b16 %v512
        %v584 = vunpack.c.l.b16 %v513
        %v585 = vunpack.c.l.b16 %v514
        %v586 = vunpack.c.l.b16 %v515
        %v587 = vunpack.c.l.b16 %v516
        %v588 = vunpack.c.l.b16 %v517
        %v589 = vunpack.c.l.b16 %v518
        %v590 = vunpack.c.l.b16 %v519
        %v591 = vunpack.c.l.b16 %v520
        %v592 = vunpack.c.l.b16 %v521
        %v593 = vunpack.c.l.b16 %v522
        %v594 = vunpack.c.l.b16 %v523
        %v595 = vunpack.c.l.b16 %v524
        %v596 = vunpack.c.l.b16 %v525
        %v597 = vunpack.c.l.b16 %v526
        %v598 = vunpack.c.l.b16 %v527
        %v599 = vpack.c.b16 %v568, %v567
        %v600 = vpack.c.b16 %v570, %v569
        %v601 = vpack.c.b16 %v572, %v571
        %v602 = vpack.c.b16 %v574, %v573
        %v603 = vpack.c.b16 %v576, %v575
        %v604 = vpack.c.b16 %v578, %v577
        %v605 = vpack.c.b16 %v580, %v579
        %v606 = vpack.c.b16 %v582, %v581
        %v607 = vpack.c.b16 %v584, %v583
        %v608 = vpack.c.b16 %v586, %v585
        %v609 = vpack.c.b16 %v588, %v587
        %v610 = vpack.c.b16 %v590, %v589
        %v611 = vpack.c.b16 %v592, %v591
        %v612 = vpack.c.b16 %v594, %v593
        %v613 = vpack.c.b16 %v596, %v595
        %v614 = vpack.c.b16 %v598, %v597
        %631 = vmatprep.subr.bf16.mxu0 0
        %632 = vmatpush1.bf16.msra.mxu0 %v606
        %633 = vmatprep.subr.bf16.mxu0 0
        %634 = vmatpush1.bf16.msra.mxu0 %v605
        %635 = vmatprep.subr.bf16.mxu0 0
        %636 = vmatpush1.bf16.msra.mxu0 %v604
        %637 = vmatprep.subr.bf16.mxu0 0
        %638 = vmatpush1.bf16.msra.mxu0 %v603
        %639 = vmatprep.subr.bf16.mxu0 0
        %640 = vmatpush1.bf16.msra.mxu0 %v602
        %641 = vmatprep.subr.bf16.mxu0 0
        %642 = vmatpush1.bf16.msra.mxu0 %v601
        %643 = vmatprep.subr.bf16.mxu0 0
        %644 = vmatpush1.bf16.msra.mxu0 %v600
        %645 = vmatprep.subr.bf16.mxu0 0
        %646 = vmatpush1.bf16.msra.mxu0 %v599
        %647 = vmatprep.subr.bf16.mxu0 0
        %648 = vmatpush2.bf16.msra.mxu0 %v614
        %649 = vmatprep.subr.bf16.mxu0 0
        %650 = vmatpush2.bf16.msra.mxu0 %v613
        %651 = vmatprep.subr.bf16.mxu0 0
        %652 = vmatpush2.bf16.msra.mxu0 %v612
        %653 = vmatprep.subr.bf16.mxu0 0
        %654 = vmatpush2.bf16.msra.mxu0 %v611
        %655 = vmatprep.subr.bf16.mxu0 0
        %656 = vmatpush2.bf16.msra.mxu0 %v610
        %657 = vmatprep.subr.bf16.mxu0 0
        %658 = vmatpush2.bf16.msra.mxu0 %v609
        %659 = vmatprep.subr.bf16.mxu0 0
        %660 = vmatpush2.bf16.msra.mxu0 %v608
        %661 = vmatprep.subr.bf16.mxu0 0
        %662 = vmatpush2.bf16.msra.mxu0 %v607
        %663 = vmatprep.mubr.bf16.mxu0 %v481
        %664 = vmatmul.mubr.bf16.gmra.mxu0 %v480
        %v665 = vpop.f32.mrf.mxu0
        %v666 = vadd.f32 %v533, %v665
        %v667 = vpop.f32.mrf.mxu0
        %v668 = vpop.f32.mrf.mxu0
        %v669 = vadd.f32 %v533, %v668
        %v670 = vpop.f32.mrf.mxu0
        %671 = vmatprep.mubr.bf16.mxu0 %v483
        %672 = vmatmul.mubr.bf16.gmra.mxu0 %v482
        %v673 = vpop.f32.mrf.mxu0
        %v674 = vadd.f32 %v533, %v673
        %v675 = vpop.f32.mrf.mxu0
        %v676 = vpop.f32.mrf.mxu0
        %v677 = vadd.f32 %v533, %v676
        %v678 = vpop.f32.mrf.mxu0
        %679 = vmatprep.mubr.bf16.mxu0 %v485
        %680 = vmatmul.mubr.bf16.gmra.mxu0 %v484
        %v681 = vpop.f32.mrf.mxu0
        %v682 = vadd.f32 %v533, %v681
        %v683 = vpop.f32.mrf.mxu0
        %v684 = vpop.f32.mrf.mxu0
        %v685 = vadd.f32 %v533, %v684
        %v686 = vpop.f32.mrf.mxu0
        %687 = vmatprep.mubr.bf16.mxu0 %v487
        %688 = vmatmul.mubr.bf16.gmra.mxu0 %v486
        %v689 = vpop.f32.mrf.mxu0
        %v690 = vadd.f32 %v533, %v689
        %v691 = vpop.f32.mrf.mxu0
        %v692 = vpop.f32.mrf.mxu0
        %v693 = vadd.f32 %v533, %v692
        %v694 = vpop.f32.mrf.mxu0
        %695 = vmatprep.mubr.bf16.mxu0 %v489
        %696 = vmatmul.mubr.bf16.gmra.mxu0 %v488
        %v697 = vpop.f32.mrf.mxu0
        %v698 = vadd.f32 %v533, %v697
        %v699 = vpop.f32.mrf.mxu0
        %v700 = vpop.f32.mrf.mxu0
        %v701 = vadd.f32 %v533, %v700
        %v702 = vpop.f32.mrf.mxu0
        %703 = vmatprep.mubr.bf16.mxu0 %v491
        %704 = vmatmul.mubr.bf16.gmra.mxu0 %v490
        %v705 = vpop.f32.mrf.mxu0
        %v706 = vadd.f32 %v533, %v705
        %v707 = vpop.f32.mrf.mxu0
        %v708 = vpop.f32.mrf.mxu0
        %v709 = vadd.f32 %v533, %v708
        %v710 = vpop.f32.mrf.mxu0
        %711 = vmatprep.mubr.bf16.mxu0 %v493
        %712 = vmatmul.mubr.bf16.gmra.mxu0 %v492
        %v713 = vpop.f32.mrf.mxu0
        %v714 = vadd.f32 %v533, %v713
        %v715 = vpop.f32.mrf.mxu0
        %v716 = vpop.f32.mrf.mxu0
        %v717 = vadd.f32 %v533, %v716
        %v718 = vpop.f32.mrf.mxu0
        %719 = vmatprep.mubr.bf16.mxu0 %v495
        %720 = vmatmul.mubr.bf16.gmra.mxu0 %v494
        %v721 = vpop.f32.mrf.mxu0
        %v722 = vadd.f32 %v533, %v721
        %v723 = vpop.f32.mrf.mxu0
        %v724 = vpop.f32.mrf.mxu0
        %v725 = vadd.f32 %v533, %v724
        %v726 = vpop.f32.mrf.mxu0
        %727 = vdwg.mxu0
        %v728 = vmul.f32 %v666, %v666
        %v729 = vmul.f32 %v669, %v669
        %v730 = vmul.f32 %v674, %v674
        %v731 = vmul.f32 %v677, %v677
        %v732 = vmul.f32 %v682, %v682
        %v733 = vmul.f32 %v685, %v685
        %v734 = vmul.f32 %v690, %v690
        %v735 = vmul.f32 %v693, %v693
        %v736 = vmul.f32 %v698, %v698
        %v737 = vmul.f32 %v701, %v701
        %v738 = vmul.f32 %v706, %v706
        %v739 = vmul.f32 %v709, %v709
        %v740 = vmul.f32 %v714, %v714
        %v741 = vmul.f32 %v717, %v717
        %v742 = vmul.f32 %v722, %v722
        %v743 = vmul.f32 %v725, %v725
        %v744 = vld [vmem:[#allocation2] sm:$0xff]
        %v745 = vld [vmem:[#allocation2 + $0x8] sm:$0xff]
        %v746 = vld [vmem:[#allocation2 + $0x10] sm:$0xff]
        %v747 = vld [vmem:[#allocation2 + $0x18] sm:$0xff]
        %v748 = vld [vmem:[#allocation2 + $0x20] sm:$0xff]
        %v749 = vld [vmem:[#allocation2 + $0x28] sm:$0xff]
        %v750 = vld [vmem:[#allocation2 + $0x30] sm:$0xff]
        %v751 = vld [vmem:[#allocation2 + $0x38] sm:$0xff]
        %v752 = vld [vmem:[#allocation2 + $0x40] sm:$0xff]
        %v753 = vld [vmem:[#allocation2 + $0x48] sm:$0xff]
        %v754 = vld [vmem:[#allocation2 + $0x50] sm:$0xff]
        %v755 = vld [vmem:[#allocation2 + $0x58] sm:$0xff]
        %v756 = vld [vmem:[#allocation2 + $0x60] sm:$0xff]
        %v757 = vld [vmem:[#allocation2 + $0x68] sm:$0xff]
        %v758 = vld [vmem:[#allocation2 + $0x70] sm:$0xff]
        %v759 = vld [vmem:[#allocation2 + $0x78] sm:$0xff]
        %760 = vmatprep.subr.mxu0 0.0
        %761 = vmatpush1.msra.mxu0 %v759
        %762 = vmatprep.subr.mxu0 0.0
        %763 = vmatpush1.msra.mxu0 %v758
        %764 = vmatprep.subr.mxu0 0.0
        %765 = vmatpush1.msra.mxu0 %v757
        %766 = vmatprep.subr.mxu0 0.0
        %767 = vmatpush1.msra.mxu0 %v756
        %768 = vmatprep.subr.mxu0 0.0
        %769 = vmatpush1.msra.mxu0 %v755
        %770 = vmatprep.subr.mxu0 0.0
        %771 = vmatpush1.msra.mxu0 %v754
        %772 = vmatprep.subr.mxu0 0.0
        %773 = vmatpush1.msra.mxu0 %v753
        %774 = vmatprep.subr.mxu0 0.0
        %775 = vmatpush1.msra.mxu0 %v752
        %776 = vmatprep.subr.mxu0 0.0
        %777 = vmatpush1.msra.mxu0 %v751
        %778 = vmatprep.subr.mxu0 0.0
        %779 = vmatpush1.msra.mxu0 %v750
        %780 = vmatprep.subr.mxu0 0.0
        %781 = vmatpush1.msra.mxu0 %v749
        %782 = vmatprep.subr.mxu0 0.0
        %783 = vmatpush1.msra.mxu0 %v748
        %784 = vmatprep.subr.mxu0 0.0
        %785 = vmatpush1.msra.mxu0 %v747
        %786 = vmatprep.subr.mxu0 0.0
        %787 = vmatpush1.msra.mxu0 %v746
        %788 = vmatprep.subr.mxu0 0.0
        %789 = vmatpush1.msra.mxu0 %v745
        %790 = vmatprep.subr.mxu0 0.0
        %791 = vmatpush1.msra.mxu0 %v744
        %792 = vmatprep.subr.mxu0 0.0
        %793 = vmatpush2.msra.mxu0 0.0
        %794 = vmatprep.subr.mxu0 0.0
        %795 = vmatpush2.msra.mxu0 0.0
        %796 = vmatprep.subr.mxu0 0.0
        %797 = vmatpush2.msra.mxu0 0.0
        %798 = vmatprep.subr.mxu0 0.0
        %799 = vmatpush2.msra.mxu0 0.0
        %800 = vmatprep.subr.mxu0 0.0
        %801 = vmatpush2.msra.mxu0 0.0
        %802 = vmatprep.subr.mxu0 0.0
        %803 = vmatpush2.msra.mxu0 0.0
        %804 = vmatprep.subr.mxu0 0.0
        %805 = vmatpush2.msra.mxu0 0.0
        %806 = vmatprep.subr.mxu0 0.0
        %807 = vmatpush2.msra.mxu0 0.0
        %808 = vmatprep.subr.mxu0 0.0
        %809 = vmatpush2.msra.mxu0 0.0
        %810 = vmatprep.subr.mxu0 0.0
        %811 = vmatpush2.msra.mxu0 0.0
        %812 = vmatprep.subr.mxu0 0.0
        %813 = vmatpush2.msra.mxu0 0.0
        %814 = vmatprep.subr.mxu0 0.0
        %815 = vmatpush2.msra.mxu0 0.0
        %816 = vmatprep.subr.mxu0 0.0
        %817 = vmatpush2.msra.mxu0 0.0
        %818 = vmatprep.subr.mxu0 0.0
        %819 = vmatpush2.msra.mxu0 0.0
        %820 = vmatprep.subr.mxu0 0.0
        %821 = vmatpush2.msra.mxu0 0.0
        %822 = vmatprep.subr.mxu0 0.0
        %823 = vmatpush2.msra.mxu0 0.0
        %824 = vmatprep.mubr.f32.mxu0 0.0
        %825 = vmatmul.mubr.f32.gmra.mxu0 %v728
        %v826 = vpop.f32.mrf.mxu0
        %v827 = vadd.f32 0.0, %v826
        %v828 = vpop.f32.mrf.mxu0
        %829 = vmatprep.mubr.f32.mxu0 0.0
        %830 = vmatmul.mubr.f32.gmra.mxu0 %v729
        %v831 = vpop.f32.mrf.mxu0
        %v832 = vadd.f32 0.0, %v831
        %v833 = vpop.f32.mrf.mxu0
        %834 = vmatprep.mubr.f32.mxu0 0.0
        %835 = vmatmul.mubr.f32.gmra.mxu0 %v730
        %v836 = vpop.f32.mrf.mxu0
        %v837 = vadd.f32 0.0, %v836
        %v838 = vpop.f32.mrf.mxu0
        %839 = vmatprep.mubr.f32.mxu0 0.0
        %840 = vmatmul.mubr.f32.gmra.mxu0 %v731
        %v841 = vpop.f32.mrf.mxu0
        %v842 = vadd.f32 0.0, %v841
        %v843 = vpop.f32.mrf.mxu0
        %844 = vmatprep.mubr.f32.mxu0 0.0
        %845 = vmatmul.mubr.f32.gmra.mxu0 %v732
        %v846 = vpop.f32.mrf.mxu0
        %v847 = vadd.f32 0.0, %v846
        %v848 = vpop.f32.mrf.mxu0
        %849 = vmatprep.mubr.f32.mxu0 0.0
        %850 = vmatmul.mubr.f32.gmra.mxu0 %v733
        %v851 = vpop.f32.mrf.mxu0
        %v852 = vadd.f32 0.0, %v851
        %v853 = vpop.f32.mrf.mxu0
        %854 = vmatprep.mubr.f32.mxu0 0.0
        %855 = vmatmul.mubr.f32.gmra.mxu0 %v734
        %v856 = vpop.f32.mrf.mxu0
        %v857 = vadd.f32 0.0, %v856
        %v858 = vpop.f32.mrf.mxu0
        %859 = vmatprep.mubr.f32.mxu0 0.0
        %860 = vmatmul.mubr.f32.gmra.mxu0 %v735
        %v861 = vpop.f32.mrf.mxu0
        %v862 = vadd.f32 0.0, %v861
        %v863 = vpop.f32.mrf.mxu0
        %864 = vmatprep.mubr.f32.mxu0 0.0
        %865 = vmatmul.mubr.f32.gmra.mxu0 %v736
        %v866 = vpop.f32.mrf.mxu0
        %v867 = vadd.f32 0.0, %v866
        %v868 = vpop.f32.mrf.mxu0
        %869 = vmatprep.mubr.f32.mxu0 0.0
        %870 = vmatmul.mubr.f32.gmra.mxu0 %v737
        %v871 = vpop.f32.mrf.mxu0
        %v872 = vadd.f32 0.0, %v871
        %v873 = vpop.f32.mrf.mxu0
        %874 = vmatprep.mubr.f32.mxu0 0.0
        %875 = vmatmul.mubr.f32.gmra.mxu0 %v738
        %v876 = vpop.f32.mrf.mxu0
        %v877 = vadd.f32 0.0, %v876
        %v878 = vpop.f32.mrf.mxu0
        %879 = vmatprep.mubr.f32.mxu0 0.0
        %880 = vmatmul.mubr.f32.gmra.mxu0 %v739
        %v881 = vpop.f32.mrf.mxu0
        %v882 = vadd.f32 0.0, %v881
        %v883 = vpop.f32.mrf.mxu0
        %884 = vmatprep.mubr.f32.mxu0 0.0
        %885 = vmatmul.mubr.f32.gmra.mxu0 %v740
        %v886 = vpop.f32.mrf.mxu0
        %v887 = vadd.f32 0.0, %v886
        %v888 = vpop.f32.mrf.mxu0
        %889 = vmatprep.mubr.f32.mxu0 0.0
        %890 = vmatmul.mubr.f32.gmra.mxu0 %v741
        %v891 = vpop.f32.mrf.mxu0
        %v892 = vadd.f32 0.0, %v891
        %v893 = vpop.f32.mrf.mxu0
        %894 = vmatprep.mubr.f32.mxu0 0.0
        %895 = vmatmul.mubr.f32.gmra.mxu0 %v742
        %v896 = vpop.f32.mrf.mxu0
        %v897 = vadd.f32 0.0, %v896
        %v898 = vpop.f32.mrf.mxu0
        %899 = vmatprep.mubr.f32.mxu0 0.0
        %900 = vmatmul.mubr.f32.gmra.mxu0 %v743
        %v901 = vpop.f32.mrf.mxu0
        %v902 = vadd.f32 0.0, %v901
        %v903 = vpop.f32.mrf.mxu0
        %904 = vdwg.mxu0
        %v905 = vmax.f32 %v827, 1e-24
        %v906 = vmax.f32 %v832, 1e-24
        %v907 = vmax.f32 %v837, 1e-24
        %v908 = vmax.f32 %v842, 1e-24
        %v909 = vmax.f32 %v847, 1e-24
        %v910 = vmax.f32 %v852, 1e-24
        %v911 = vmax.f32 %v857, 1e-24
        %v912 = vmax.f32 %v862, 1e-24
        %v913 = vmax.f32 %v867, 1e-24
        %v914 = vmax.f32 %v872, 1e-24
        %v915 = vmax.f32 %v877, 1e-24
        %v916 = vmax.f32 %v882, 1e-24
        %v917 = vmax.f32 %v887, 1e-24
        %v918 = vmax.f32 %v892, 1e-24
        %v919 = vmax.f32 %v897, 1e-24
        %v920 = vmax.f32 %v902, 1e-24
        %v921 = vrsqrt.pop %v905
        %v922 = vrsqrt.pop %v906
        %v923 = vrsqrt.pop %v907
        %v924 = vrsqrt.pop %v908
        %v925 = vrsqrt.pop %v909
        %v926 = vrsqrt.pop %v910
        %v927 = vrsqrt.pop %v911
        %v928 = vrsqrt.pop %v912
        %v929 = vrsqrt.pop %v913
        %v930 = vrsqrt.pop %v914
        %v931 = vrsqrt.pop %v915
        %v932 = vrsqrt.pop %v916
        %v933 = vrsqrt.pop %v917
        %v934 = vrsqrt.pop %v918
        %v935 = vrsqrt.pop %v919
        %v936 = vrsqrt.pop %v920
        %v937 = vmul.f32 %v666, %v921
        %v938 = vmul.f32 %v669, %v922
        %v939 = vmul.f32 %v674, %v923
        %v940 = vmul.f32 %v677, %v924
        %v941 = vmul.f32 %v682, %v925
        %v942 = vmul.f32 %v685, %v926
        %v943 = vmul.f32 %v690, %v927
        %v944 = vmul.f32 %v693, %v928
        %v945 = vmul.f32 %v698, %v929
        %v946 = vmul.f32 %v701, %v930
        %v947 = vmul.f32 %v706, %v931
        %v948 = vmul.f32 %v709, %v932
        %v949 = vmul.f32 %v714, %v933
        %v950 = vmul.f32 %v717, %v934
        %v951 = vmul.f32 %v722, %v935
        %v952 = vmul.f32 %v725, %v936
        %953 = vst [vmem:[%s233] sm:$0xff] %v937
        %954 = vst [vmem:[%s233 + $0x8] sm:$0xff] %v938
        %955 = vst [vmem:[%s233 + $0x10] sm:$0xff] %v939
        %956 = vst [vmem:[%s233 + $0x18] sm:$0xff] %v940
        %957 = vst [vmem:[%s233 + $0x20] sm:$0xff] %v941
        %958 = vst [vmem:[%s233 + $0x28] sm:$0xff] %v942
        %959 = vst [vmem:[%s233 + $0x30] sm:$0xff] %v943
        %960 = vst [vmem:[%s233 + $0x38] sm:$0xff] %v944
        %961 = vst [vmem:[%s233 + $0x40] sm:$0xff] %v945
        %962 = vst [vmem:[%s233 + $0x48] sm:$0xff] %v946
        %963 = vst [vmem:[%s233 + $0x50] sm:$0xff] %v947
        %964 = vst [vmem:[%s233 + $0x58] sm:$0xff] %v948
        %965 = vst [vmem:[%s233 + $0x60] sm:$0xff] %v949
        %966 = vst [vmem:[%s233 + $0x68] sm:$0xff] %v950
        %967 = vst [vmem:[%s233 + $0x70] sm:$0xff] %v951
        %968 = vst [vmem:[%s233 + $0x78] sm:$0xff] %v952
        %s969 = sand.u32 %s138, 1
        %s970 = scalar_lea.sflag [#allocation4], %s969
        %s971 = sand.u32 %s138, 1
        %s972 = smul.addr %s971, 128
        %s973 = scalar_lea.vmem [#allocation5], %s972
        // Predicated region
        $region45: #{tpu_custom_call.1} parent=39 // pred_check
          %p974 = pneg %p148
        $region46: #{tpu_custom_call.1} parent=39 // pred_check_branch
          %976 = sbr.rel (%p974) target = $region48
        $region47: #{tpu_custom_call.1} parent=39 // pred_region
          %s977 = smul.u32 16, %s20
          %s979 = ssub.s32 2048, 2048
          %980 = vsyncadd %s970, %s979
          %s981 = smul.addr %s977, 128
          %s982 = scalar_lea.hbm %s5, %s981
          %s983 = sshll.u32 %s973, 4
          %s984 = int_to_ptr.vmem [resolvable:$true] %s983
          %989 = dma.vmem_to_hbm [thread:$0]  %s984, 2048, %s982, %s970, 128, 128, 8
        $region48: #{tpu_custom_call.1} parent=39 // pred_fallthru
          _
      $region40: #{tpu_custom_call.1} parent=5 // pred_fallthru
        _
      %p990 = scmp.le.s32.totalorder 2, %s15
      // Predicated region
      $region49: #{tpu_custom_call.1} parent=5 // pred_check
        %p991 = pneg %p990
      $region50: #{tpu_custom_call.1} parent=5 // pred_check_branch
        %993 = sbr.rel (%p991) target = $region52
      $region51: #{tpu_custom_call.1} parent=5 // pred_region
        %s994 = ssub.s32 %s15, 2
        // Predicated region
        $region53: #{tpu_custom_call.1} parent=51 // pred_check
          %p995 = pneg %p154
        $region54: #{tpu_custom_call.1} parent=51 // pred_check_branch
          %997 = sbr.rel (%p995) target = $region56
        $region55: #{tpu_custom_call.1} parent=51 // pred_region
          %s998 = sand.u32 %s139, 1
          %s999 = scalar_lea.sflag [#allocation4], %s998
          %s1000 = sand.u32 %s139, 1
          %s1001 = smul.addr %s1000, 128
          %s1002 = scalar_lea.vmem [#allocation5], %s1001
          %1003 = dma.done %s999, 2048
        $region56: #{tpu_custom_call.1} parent=51 // pred_fallthru
          _
      $region52: #{tpu_custom_call.1} parent=5 // pred_fallthru
        _
    $region6: #{tpu_custom_call.1} parent=1 // loop_footer
      %s19 = sadd.s32 1, %s15
    $region7: #{tpu_custom_call.1} parent=1 // loop_footer_branch
      %14 = sbr.rel target = $region3
    $region8: #{tpu_custom_call.1} parent=1 // loop_exit
      _
    %1004 = vsyncpa [#allocation3], 1
    %s1005 = scalar_lea.sflag [#allocation3], 1
    %1006 = vsyncpa %s1005, 1
    %1007 = vsyncpa [#allocation4], 1
    %s1008 = scalar_lea.sflag [#allocation4], 1
    %1009 = vsyncpa %s1008, 1

</llo_original>
